<compile_context>
chip_gen: v7x
topology: tpu7x:2x2x1
jax: 0.10.0
libtpu: 0.0.40
codegen_flags: <defaults>
</compile_context>

<pallas_src>
import functools

import jax
import jax.numpy as jnp
from jax.experimental import pallas as pl
from jax.experimental.pallas import tpu as pltpu


def _round_up(a, b):
    return (a + b - 1) // b * b


def _gate_and_blend(logits, x_cols, y_cols, o_ref):
    """gate = sigmoid(logits); out = gate*x + (1-gate)*y."""
    gate = jax.nn.sigmoid(logits)                      # f32, EUP
    if o_ref.dtype == jnp.bfloat16:
        # bf16 VALU path (v6e/v7x): only the logits/sigmoid stay in f32.
        g = gate.astype(jnp.bfloat16)
        out = g * x_cols + (1.0 - g) * y_cols
    else:
        xf = x_cols.astype(jnp.float32)
        yf = y_cols.astype(jnp.float32)
        out = gate * xf + (1.0 - gate) * yf
    o_ref[...] = out.astype(o_ref.dtype)


def _gating_kernel_fullw(x_ref, y_ref, wx_ref, wy_ref, b_ref, o_ref, *,
                         compute_dtype):
    """Both full (Hp, Hp) weights resident; grid axis 1 has extent 1."""
    x = x_ref[...]                                     # (tm, Hp)
    y = y_ref[...]
    logits = (
        jnp.dot(x.astype(compute_dtype), wx_ref[...],
                preferred_element_type=jnp.float32)
        + jnp.dot(y.astype(compute_dtype), wy_ref[...],
                  preferred_element_type=jnp.float32)
        + b_ref[...]                                   # (1, Hp) pre-summed bias
    )
    _gate_and_blend(logits, x, y, o_ref)


def _gating_kernel_coltiled(x_ref, y_ref, xc_ref, yc_ref, wx_ref, wy_ref,
                            b_ref, o_ref, *, compute_dtype):
    """Weights tiled along the output dim (for large H / v7x's 64 MiB VMEM).

    x_ref/y_ref carry the full K (= Hp) rows for the matmul; xc_ref/yc_ref are
    the matching (tm, tn) column tiles used by the elementwise blend.
    """
    logits = (
        jnp.dot(x_ref[...].astype(compute_dtype), wx_ref[...],
                preferred_element_type=jnp.float32)
        + jnp.dot(y_ref[...].astype(compute_dtype), wy_ref[...],
                  preferred_element_type=jnp.float32)
        + b_ref[...]
    )
    _gate_and_blend(logits, xc_ref[...], yc_ref[...], o_ref)


def gating_residual(x, y, wx, bx, wy, by, *, tm=256, tn=None,
                    compute_dtype=None,
                    weight_vmem_budget=32 * 1024 * 1024):
    """GatingResidual forward.

    x, y: (..., H).  wx, wy: (H, H) stored as (in, out) — i.e. transposed
    relative to torch.nn.Linear.weight.  bx, by: (H,).
    """
    orig_shape = x.shape
    H = orig_shape[-1]
    out_dtype = x.dtype
    if compute_dtype is None:
        # MXU operand dtype; accumulation is always f32. Pass bf16 inputs (or
        # compute_dtype=jnp.bfloat16) for 2x MXU throughput on v6e/v7x.
        compute_dtype = x.dtype

    x2 = x.reshape(-1, H)
    y2 = y.reshape(-1, H)
    M = x2.shape[0]

    act_bytes = jnp.dtype(x.dtype).itemsize
    cmp_bytes = jnp.dtype(compute_dtype).itemsize
    sublane = 8 if act_bytes >= 4 else 16

    # Lane-dense hidden dim (multiple of 128) -> unmasked full-vreg stores.
    Hp = _round_up(H, 128)

    # Large row tile for MXU utilization; shrink for tiny M.
    tm_eff = min(_round_up(tm, sublane), _round_up(M, sublane))
    Mp = _round_up(M, tm_eff)
    num_m = Mp // tm_eff

    # Output-column tile: keep the two resident weight tiles under the VMEM
    # budget so the kernel also fits v7x (64 MiB VMEM) at large H.
    if tn is None:
        max_cols = max(128, weight_vmem_budget // max(1, 2 * Hp * cmp_bytes))
        tn = min(Hp, (max_cols // 128) * 128)
    tn = min(_round_up(tn, 128), Hp)
    num_n = pl.cdiv(Hp, tn)
    Hp = num_n * tn                     # re-pad so tn divides Hp exactly

    # --- zero-pad operands (padded K rows/cols contribute exactly 0) --------
    def pad2(a, rows, cols):
        pr, pc = rows - a.shape[0], cols - a.shape[1]
        return jnp.pad(a, ((0, pr), (0, pc))) if (pr or pc) else a

    x2p = pad2(x2, Mp, Hp)
    y2p = pad2(y2, Mp, Hp)
    wx_p = pad2(wx, Hp, Hp).astype(compute_dtype)
    wy_p = pad2(wy, Hp, Hp).astype(compute_dtype)
    # Pre-summed bias: one resident operand and one VPU add fewer per step.
    b = jnp.pad((bx.astype(jnp.float32) + by.astype(jnp.float32)),
                (0, Hp - H)).reshape(1, Hp)

    # --- specs ---------------------------------------------------------------
    x_spec = pl.BlockSpec((tm_eff, Hp), lambda i, n: (i, 0))   # full-K rows
    w_spec = pl.BlockSpec((Hp, tn), lambda i, n: (0, n))
    b_spec = pl.BlockSpec((1, tn), lambda i, n: (0, n))
    o_spec = pl.BlockSpec((tm_eff, tn), lambda i, n: (i, n))

    if num_n == 1:
        kernel = functools.partial(_gating_kernel_fullw,
                                   compute_dtype=compute_dtype)
        in_specs = [x_spec, x_spec, w_spec, w_spec, b_spec]
        operands = (x2p, y2p, wx_p, wy_p, b)
    else:
        c_spec = pl.BlockSpec((tm_eff, tn), lambda i, n: (i, n))
        kernel = functools.partial(_gating_kernel_coltiled,
                                   compute_dtype=compute_dtype)
        in_specs = [x_spec, x_spec, c_spec, c_spec, w_spec, w_spec, b_spec]
        operands = (x2p, y2p, x2p, y2p, wx_p, wy_p, b)

    # Scoped-VMEM budget: resident weights + double-buffered tiles + headroom,
    # raised above the 16/32 MiB defaults but capped at 64 MiB (v7x physical).
    vmem_est = (
        2 * Hp * tn * cmp_bytes * 2             # wx, wy tiles (double-buffered)
        + 2 * tn * 4 * 2                        # bias
        + 2 * tm_eff * Hp * act_bytes * 2       # x, y row tiles
        + (2 * tm_eff * tn * act_bytes * 2 if num_n > 1 else 0)
        + tm_eff * tn * act_bytes * 2           # output tile
        + 6 * tm_eff * tn * 4                   # f32 intermediates
    )
    vmem_limit = int(min(max(vmem_est + (4 << 20), 32 << 20), 64 << 20))

    out = pl.pallas_call(
        kernel,
        out_shape=jax.ShapeDtypeStruct((Mp, Hp), out_dtype),
        grid_spec=pltpu.PrefetchScalarGridSpec(
            num_scalar_prefetch=0,
            grid=(num_m, num_n),
            in_specs=in_specs,
            out_specs=o_spec,
        ),
        compiler_params=pltpu.CompilerParams(
            dimension_semantics=("parallel", "parallel"),
            vmem_limit_bytes=vmem_limit,
        ),
    )(*operands)

    out = out[:M, :H]
    return out.reshape(orig_shape)


# ------------------------------- test harness -------------------------------

def xavier_uniform(key, fan_in, fan_out, dtype=jnp.float32):
    # Matches torch.nn.init.xavier_uniform_ bound.
    bound = (6.0 / (fan_in + fan_out)) ** 0.5
    return jax.random.uniform(key, (fan_in, fan_out), dtype,
                              minval=-bound, maxval=bound)


def reference(x, y, wx, bx, wy, by):
    cd = x.dtype
    hp = jax.lax.Precision.HIGHEST
    logits = (jnp.dot(x.astype(cd), wx.astype(cd), precision=hp,
                      preferred_element_type=jnp.float32)
              + jnp.dot(y.astype(cd), wy.astype(cd), precision=hp,
                        preferred_element_type=jnp.float32)
              + (bx.astype(jnp.float32) + by.astype(jnp.float32)))
    gate = jax.nn.sigmoid(logits)
    if x.dtype == jnp.bfloat16:
        g = gate.astype(jnp.bfloat16)
        out = g * x + (1.0 - g) * y
    else:
        out = gate * x.astype(jnp.float32) + (1.0 - gate) * y.astype(jnp.float32)
    return out.astype(x.dtype)


if __name__ == "__main__":
    key = jax.random.PRNGKey(0)
    k1, k2, k3, k4, k5, k6, k7, k8 = jax.random.split(key, 8)

    # --- Test 1: f32, H=32 (lane padding 32 -> 128, full-weight kernel) -----
    B, S, H = 2, 8, 32
    x = jax.random.normal(k1, (B, S, H), jnp.float32)
    y = jax.random.normal(k2, (B, S, H), jnp.float32)
    wx = xavier_uniform(k3, H, H)
    wy = xavier_uniform(k4, H, H)
    bx = jnp.zeros((H,), jnp.float32)
    by = jnp.zeros((H,), jnp.float32)

    out = jax.block_until_ready(gating_residual(x, y, wx, bx, wy, by))
    ref = reference(x, y, wx, bx, wy, by)
    assert out.shape == x.shape and out.dtype == x.dtype
    assert jnp.allclose(out, ref, atol=1e-5, rtol=1e-5), "f32 mismatch"

    # --- Test 2: bf16 inputs/weights (row + lane padding, bf16 MXU/blend) ---
    B, S, H = 2, 12, 96
    xb = jax.random.normal(k5, (B, S, H), jnp.float32).astype(jnp.bfloat16)
    yb = jax.random.normal(k6, (B, S, H), jnp.float32).astype(jnp.bfloat16)
    wxb = xavier_uniform(k7, H, H).astype(jnp.bfloat16)
    wyb = xavier_uniform(k8, H, H).astype(jnp.bfloat16)
    bzb = jnp.zeros((H,), jnp.float32)

    outb = jax.block_until_ready(gating_residual(xb, yb, wxb, bzb, wyb, bzb))
    refb = reference(xb, yb, wxb, bzb, wyb, bzb)
    assert outb.shape == xb.shape and outb.dtype == jnp.bfloat16
    assert jnp.allclose(outb.astype(jnp.float32), refb.astype(jnp.float32),
                        atol=5e-2, rtol=5e-2), "bf16 mismatch"

    # --- Test 3: f32, H=256 with forced output-column tiling (tn=128) -------
    k9, k10, k11, k12 = jax.random.split(k1, 4)
    B, S, H = 2, 8, 256
    x3 = jax.random.normal(k9, (B, S, H), jnp.float32)
    y3 = jax.random.normal(k10, (B, S, H), jnp.float32)
    wx3 = xavier_uniform(k11, H, H)
    wy3 = xavier_uniform(k12, H, H)
    bz3 = jnp.zeros((H,), jnp.float32)

    out3 = jax.block_until_ready(
        gating_residual(x3, y3, wx3, bz3, wy3, bz3, tn=128))
    ref3 = reference(x3, y3, wx3, bz3, wy3, bz3)
    assert jnp.allclose(out3, ref3, atol=1e-4, rtol=1e-4), "col-tiled mismatch"

    print("KERNEL_OK")
</pallas_src>

<mosaic_0001>
module attributes {stable_mosaic.version = 11 : i64} {
  func.func @_gating_kernel_fullw(%arg0: i32, %arg1: i32, %arg2: memref<16x128xf32, #tpu.memory_space<vmem>>, %arg3: memref<16x128xf32, #tpu.memory_space<vmem>>, %arg4: memref<128x128xf32, #tpu.memory_space<vmem>>, %arg5: memref<128x128xf32, #tpu.memory_space<vmem>>, %arg6: memref<1x128xf32, #tpu.memory_space<vmem>>, %arg7: memref<16x128xf32, #tpu.memory_space<vmem>>) attributes {dimension_semantics = [#tpu.dimension_semantics<parallel>, #tpu.dimension_semantics<parallel>], iteration_bounds = array<i64: 1, 1>, scalar_prefetch = 0 : i64, scratch_operands = 0 : i64, tpu.core_type = #tpu.core_type<tc>, window_params = [{transform_indices = @transform_0, window_bounds = array<i64: 16, 128>}, {transform_indices = @transform_1, window_bounds = array<i64: 16, 128>}, {transform_indices = @transform_2, window_bounds = array<i64: 128, 128>}, {transform_indices = @transform_3, window_bounds = array<i64: 128, 128>}, {transform_indices = @transform_4, window_bounds = array<i64: 1, 128>}, {transform_indices = @transform_5, window_bounds = array<i64: 16, 128>}]} {
    %c0 = arith.constant 0 : index
    %c0_0 = arith.constant 0 : index
    %0 = vector.load %arg2[%c0, %c0_0] : memref<16x128xf32, #tpu.memory_space<vmem>>, vector<16x128xf32>
    %c0_1 = arith.constant 0 : index
    %c0_2 = arith.constant 0 : index
    %1 = vector.load %arg3[%c0_1, %c0_2] : memref<16x128xf32, #tpu.memory_space<vmem>>, vector<16x128xf32>
    %c0_3 = arith.constant 0 : index
    %c0_4 = arith.constant 0 : index
    %2 = vector.load %arg4[%c0_3, %c0_4] : memref<128x128xf32, #tpu.memory_space<vmem>>, vector<128x128xf32>
    %cst = arith.constant dense<0.000000e+00> : vector<16x128xf32>
    %3 = tpu.matmul %0, %2, %cst {dimension_numbers = #tpu.dot_dimension_numbers<[1], [0], [0], [1], [0, 0, 1, 1], [], []>} : vector<16x128xf32>, vector<128x128xf32>, vector<16x128xf32> -> vector<16x128xf32>
    %c0_5 = arith.constant 0 : index
    %c0_6 = arith.constant 0 : index
    %4 = vector.load %arg5[%c0_5, %c0_6] : memref<128x128xf32, #tpu.memory_space<vmem>>, vector<128x128xf32>
    %cst_7 = arith.constant dense<0.000000e+00> : vector<16x128xf32>
    %5 = tpu.matmul %1, %4, %cst_7 {dimension_numbers = #tpu.dot_dimension_numbers<[1], [0], [0], [1], [0, 0, 1, 1], [], []>} : vector<16x128xf32>, vector<128x128xf32>, vector<16x128xf32> -> vector<16x128xf32>
    %6 = arith.addf %3, %5 : vector<16x128xf32>
    %c0_8 = arith.constant 0 : index
    %c0_9 = arith.constant 0 : index
    %7 = vector.load %arg6[%c0_8, %c0_9] : memref<1x128xf32, #tpu.memory_space<vmem>>, vector<1x128xf32>
    %8 = vector.broadcast %7 : vector<1x128xf32> to vector<16x128xf32>
    %9 = arith.addf %6, %8 : vector<16x128xf32>
    %10 = arith.negf %9 : vector<16x128xf32>
    %11 = math.exp %10 : vector<16x128xf32>
    %cst_10 = arith.constant 1.000000e+00 : f32
    %12 = vector.broadcast %cst_10 : f32 to vector<16x128xf32>
    %13 = arith.addf %12, %11 : vector<16x128xf32>
    %14 = arith.divf %12, %13 : vector<16x128xf32>
    %15 = arith.mulf %14, %0 : vector<16x128xf32>
    %cst_11 = arith.constant 1.000000e+00 : f32
    %16 = vector.broadcast %cst_11 : f32 to vector<16x128xf32>
    %17 = arith.subf %16, %14 : vector<16x128xf32>
    %18 = arith.mulf %17, %1 : vector<16x128xf32>
    %19 = arith.addf %15, %18 : vector<16x128xf32>
    %c0_12 = arith.constant 0 : index
    %c0_13 = arith.constant 0 : index
    %20 = vector.load %arg7[%c0_12, %c0_13] : memref<16x128xf32, #tpu.memory_space<vmem>>, vector<16x128xf32>
    tpu.vector_store %arg7[%c0_12, %c0_13], %19 {strides = array<i32>} : memref<16x128xf32, #tpu.memory_space<vmem>>, vector<16x128xf32>,
    return
  }
  func.func @transform_0(%arg0: i32, %arg1: i32) -> (i32, i32) {
    %c0_i32 = arith.constant 0 : i32
    %c0_i32_0 = arith.constant 0 : i32
    return %arg0, %c0_i32 : i32, i32
  }
  func.func @transform_1(%arg0: i32, %arg1: i32) -> (i32, i32) {
    %c0_i32 = arith.constant 0 : i32
    %c0_i32_0 = arith.constant 0 : i32
    return %arg0, %c0_i32 : i32, i32
  }
  func.func @transform_2(%arg0: i32, %arg1: i32) -> (i32, i32) {
    %c0_i32 = arith.constant 0 : i32
    %c0_i32_0 = arith.constant 0 : i32
    return %c0_i32, %arg1 : i32, i32
  }
  func.func @transform_3(%arg0: i32, %arg1: i32) -> (i32, i32) {
    %c0_i32 = arith.constant 0 : i32
    %c0_i32_0 = arith.constant 0 : i32
    return %c0_i32, %arg1 : i32, i32
  }
  func.func @transform_4(%arg0: i32, %arg1: i32) -> (i32, i32) {
    %c0_i32 = arith.constant 0 : i32
    %c0_i32_0 = arith.constant 0 : i32
    return %c0_i32, %arg1 : i32, i32
  }
  func.func @transform_5(%arg0: i32, %arg1: i32) -> (i32, i32) {
    %c0_i32 = arith.constant 0 : i32
    return %arg0, %arg1 : i32, i32
  }
}

</mosaic_0001>

<llo_original>
// kernel: tpu_custom_call.1
$region0: #{tpu_custom_call.1}
  #allocation0 [shape = 'u32[]', space=smem, size = 0x4, offset = 0x4, fixed_abs, tag = 'smem constant byte address 0x4 - core index']
  #allocation1 [shape = 'u32[144,128]{1,0:T(1,128)}', space=vmem, size = 0x12000, scoped, tag = 'internal scratch']
  %s0 = inlined_call_operand.hbm [shape: f32[16,128], index: 0, kind: input, shape index: {}]
  %s1 = inlined_call_operand.hbm [shape: f32[16,128], index: 1, kind: input, shape index: {}]
  %s2 = inlined_call_operand.hbm [shape: f32[128,128], index: 2, kind: input, shape index: {}]
  %s3 = inlined_call_operand.hbm [shape: f32[128,128], index: 3, kind: input, shape index: {}]
  %s4 = inlined_call_operand.vmem [shape: f32[1,128], index: 4, kind: input, shape index: {}]
  %s5 = inlined_call_operand.hbm [shape: f32[16,128], index: 5, kind: output, shape index: {}]
  %s6 = sld [smem:[#allocation0]]
  $region46: #{tpu_custom_call.1} parent=0
    _
  %s8 = ssub.s32 1, %s6
  %s9 = scalar_select 0, %s8, %s6
  $region1: #{tpu_custom_call.1} parent=0
    #allocation2 [shape = 'u8[8192]{0}', space=vmem, size = 0x2000, scoped, tag = 'input window, operand 0, single buffered']
    #allocation3 [shape = 's32[1]{0}', space=sflag, size = 0x4, scoped, tag = 'scoped memory for tpu_custom_call.1']
    #allocation4 [shape = 's32[1]{0}', space=sflag, size = 0x4, scoped, tag = 'scoped memory for tpu_custom_call.1']
    #allocation5 [shape = 'u8[8192]{0}', space=vmem, size = 0x2000, scoped, tag = 'input window, operand 1, single buffered']
    #allocation6 [shape = 's32[1]{0}', space=sflag, size = 0x4, scoped, tag = 'scoped memory for tpu_custom_call.1']
    #allocation7 [shape = 'u8[65536]{0}', space=vmem, size = 0x10000, scoped, tag = 'input window, operand 2, single buffered']
    #allocation8 [shape = 'u8[65536]{0}', space=vmem, size = 0x10000, scoped, tag = 'input window, operand 3, single buffered']
    #allocation9 [shape = 's32[1]{0}', space=sflag, size = 0x4, scoped, tag = 'scoped memory for tpu_custom_call.1']
    #allocation10 [shape = 'u8[8192]{0}', space=vmem, size = 0x2000, scoped, tag = 'output window, operand 0, single buffered']
    %10 = vsyncpa [#allocation3], 0
    %11 = vsyncpa [#allocation6], 0
    %12 = vsyncpa [#allocation9], 0
    %13 = vsyncpa [#allocation4], 0
    // Predicated region
    $region2: #{tpu_custom_call.1} parent=1 // pred_check
      _
    $region3: #{tpu_custom_call.1} parent=1 // pred_check_branch
      %15 = sbr.rel (0) target = $region5
    $region4: #{tpu_custom_call.1} parent=1 // pred_region
      %s17 = ssub.s32 256, 256
      %18 = vsyncadd [#allocation3], %s17
      %s19 = sshll.u32 [#allocation2], 4
      %s20 = int_to_ptr.vmem [resolvable:$true] %s19
      %25 = dma.hbm_to_vmem [thread:$0]  %s0, 256, %s20, [#allocation3], 128, 128, 8
    $region5: #{tpu_custom_call.1} parent=1 // pred_fallthru
      _
    // Predicated region
    $region6: #{tpu_custom_call.1} parent=1 // pred_check
      _
    $region7: #{tpu_custom_call.1} parent=1 // pred_check_branch
      %27 = sbr.rel (0) target = $region9
    $region8: #{tpu_custom_call.1} parent=1 // pred_region
      %s29 = ssub.s32 256, 256
      %30 = vsyncadd [#allocation6], %s29
      %s31 = sshll.u32 [#allocation5], 4
      %s32 = int_to_ptr.vmem [resolvable:$true] %s31
      %37 = dma.hbm_to_vmem [thread:$0]  %s1, 256, %s32, [#allocation6], 128, 128, 8
    $region9: #{tpu_custom_call.1} parent=1 // pred_fallthru
      _
    // Predicated region
    $region10: #{tpu_custom_call.1} parent=1 // pred_check
      _
    $region11: #{tpu_custom_call.1} parent=1 // pred_check_branch
      %39 = sbr.rel (0) target = $region13
    $region12: #{tpu_custom_call.1} parent=1 // pred_region
      %s41 = ssub.s32 2048, 2048
      %42 = vsyncadd [#allocation6], %s41
      %s43 = sshll.u32 [#allocation7], 4
      %s44 = int_to_ptr.vmem [resolvable:$true] %s43
      %49 = dma.hbm_to_vmem [thread:$0]  %s2, 2048, %s44, [#allocation6], 128, 128, 8
    $region13: #{tpu_custom_call.1} parent=1 // pred_fallthru
      _
    // Predicated region
    $region14: #{tpu_custom_call.1} parent=1 // pred_check
      _
    $region15: #{tpu_custom_call.1} parent=1 // pred_check_branch
      %51 = sbr.rel (0) target = $region17
    $region16: #{tpu_custom_call.1} parent=1 // pred_region
      %s53 = ssub.s32 2048, 2048
      %54 = vsyncadd [#allocation9], %s53
      %s55 = sshll.u32 [#allocation8], 4
      %s56 = int_to_ptr.vmem [resolvable:$true] %s55
      %61 = dma.hbm_to_vmem [thread:$0]  %s3, 2048, %s56, [#allocation9], 128, 128, 8
    $region17: #{tpu_custom_call.1} parent=1 // pred_fallthru
      _
    // Predicated region
    $region18: #{tpu_custom_call.1} parent=1 // pred_check
      _
    $region19: #{tpu_custom_call.1} parent=1 // pred_check_branch
      %63 = sbr.rel (0) target = $region21
    $region20: #{tpu_custom_call.1} parent=1 // pred_region
      _
    $region21: #{tpu_custom_call.1} parent=1 // pred_fallthru
      _
    // Predicated region
    $region22: #{tpu_custom_call.1} parent=1 // pred_check
      _
    $region23: #{tpu_custom_call.1} parent=1 // pred_check_branch
      %65 = sbr.rel (0) target = $region25
    $region24: #{tpu_custom_call.1} parent=1 // pred_region
      %66 = dma.done [#allocation3], 256
    $region25: #{tpu_custom_call.1} parent=1 // pred_fallthru
      _
    // Predicated region
    $region26: #{tpu_custom_call.1} parent=1 // pred_check
      _
    $region27: #{tpu_custom_call.1} parent=1 // pred_check_branch
      %68 = sbr.rel (0) target = $region29
    $region28: #{tpu_custom_call.1} parent=1 // pred_region
      %69 = dma.done [#allocation6], 256
    $region29: #{tpu_custom_call.1} parent=1 // pred_fallthru
      _
    // Predicated region
    $region30: #{tpu_custom_call.1} parent=1 // pred_check
      _
    $region31: #{tpu_custom_call.1} parent=1 // pred_check_branch
      %71 = sbr.rel (0) target = $region33
    $region32: #{tpu_custom_call.1} parent=1 // pred_region
      %72 = dma.done [#allocation6], 2048
    $region33: #{tpu_custom_call.1} parent=1 // pred_fallthru
      _
    // Predicated region
    $region34: #{tpu_custom_call.1} parent=1 // pred_check
      _
    $region35: #{tpu_custom_call.1} parent=1 // pred_check_branch
      %74 = sbr.rel (0) target = $region37
    $region36: #{tpu_custom_call.1} parent=1 // pred_region
      %75 = dma.done [#allocation9], 2048
    $region37: #{tpu_custom_call.1} parent=1 // pred_fallthru
      _
    %v76 = vld [vmem:[#allocation2] sm:$0xff]
    %v77 = vld [vmem:[#allocation2 + $0x8] sm:$0xff]
    %v78 = vld [vmem:[#allocation5] sm:$0xff]
    %v79 = vld [vmem:[#allocation5 + $0x8] sm:$0xff]
    %v80 = vld [vmem:[#allocation7] sm:$0xff]
    %v81 = vld [vmem:[#allocation7 + $0x8] sm:$0xff]
    %v82 = vld [vmem:[#allocation7 + $0x10] sm:$0xff]
    %v83 = vld [vmem:[#allocation7 + $0x18] sm:$0xff]
    %v84 = vld [vmem:[#allocation7 + $0x20] sm:$0xff]
    %v85 = vld [vmem:[#allocation7 + $0x28] sm:$0xff]
    %v86 = vld [vmem:[#allocation7 + $0x30] sm:$0xff]
    %v87 = vld [vmem:[#allocation7 + $0x38] sm:$0xff]
    %v88 = vld [vmem:[#allocation7 + $0x40] sm:$0xff]
    %v89 = vld [vmem:[#allocation7 + $0x48] sm:$0xff]
    %v90 = vld [vmem:[#allocation7 + $0x50] sm:$0xff]
    %v91 = vld [vmem:[#allocation7 + $0x58] sm:$0xff]
    %v92 = vld [vmem:[#allocation7 + $0x60] sm:$0xff]
    %v93 = vld [vmem:[#allocation7 + $0x68] sm:$0xff]
    %v94 = vld [vmem:[#allocation7 + $0x70] sm:$0xff]
    %v95 = vld [vmem:[#allocation7 + $0x78] sm:$0xff]
    %v96 = vld [vmem:[#allocation8] sm:$0xff]
    %v97 = vld [vmem:[#allocation8 + $0x8] sm:$0xff]
    %v98 = vld [vmem:[#allocation8 + $0x10] sm:$0xff]
    %v99 = vld [vmem:[#allocation8 + $0x18] sm:$0xff]
    %v100 = vld [vmem:[#allocation8 + $0x20] sm:$0xff]
    %v101 = vld [vmem:[#allocation8 + $0x28] sm:$0xff]
    %v102 = vld [vmem:[#allocation8 + $0x30] sm:$0xff]
    %v103 = vld [vmem:[#allocation8 + $0x38] sm:$0xff]
    %v104 = vld [vmem:[#allocation8 + $0x40] sm:$0xff]
    %v105 = vld [vmem:[#allocation8 + $0x48] sm:$0xff]
    %v106 = vld [vmem:[#allocation8 + $0x50] sm:$0xff]
    %v107 = vld [vmem:[#allocation8 + $0x58] sm:$0xff]
    %v108 = vld [vmem:[#allocation8 + $0x60] sm:$0xff]
    %v109 = vld [vmem:[#allocation8 + $0x68] sm:$0xff]
    %v110 = vld [vmem:[#allocation8 + $0x70] sm:$0xff]
    %v111 = vld [vmem:[#allocation8 + $0x78] sm:$0xff]
    %112 = vmatprep.subr.mxu0 0.0
    %113 = vmatpush1.msra.mxu0 %v96
    %114 = vmatprep.subr.mxu0 0.0
    %115 = vmatpush1.msra.mxu0 %v97
    %116 = vmatprep.subr.mxu0 0.0
    %117 = vmatpush1.msra.mxu0 %v98
    %118 = vmatprep.subr.mxu0 0.0
    %119 = vmatpush1.msra.mxu0 %v99
    %120 = vmatprep.subr.mxu0 0.0
    %121 = vmatpush1.msra.mxu0 %v100
    %122 = vmatprep.subr.mxu0 0.0
    %123 = vmatpush1.msra.mxu0 %v101
    %124 = vmatprep.subr.mxu0 0.0
    %125 = vmatpush1.msra.mxu0 %v102
    %126 = vmatprep.subr.mxu0 0.0
    %127 = vmatpush1.msra.mxu0 %v103
    %128 = vmatprep.subr.mxu0 0.0
    %129 = vmatpush1.msra.mxu0 %v104
    %130 = vmatprep.subr.mxu0 0.0
    %131 = vmatpush1.msra.mxu0 %v105
    %132 = vmatprep.subr.mxu0 0.0
    %133 = vmatpush1.msra.mxu0 %v106
    %134 = vmatprep.subr.mxu0 0.0
    %135 = vmatpush1.msra.mxu0 %v107
    %136 = vmatprep.subr.mxu0 0.0
    %137 = vmatpush1.msra.mxu0 %v108
    %138 = vmatprep.subr.mxu0 0.0
    %139 = vmatpush1.msra.mxu0 %v109
    %140 = vmatprep.subr.mxu0 0.0
    %141 = vmatpush1.msra.mxu0 %v110
    %142 = vmatprep.subr.mxu0 0.0
    %143 = vmatpush1.msra.mxu0 %v111
    %144 = vmatprep.subr.mxu0 0.0
    %145 = vmatpush1.msra.mxu0 0.0
    %146 = vmatprep.subr.mxu0 0.0
    %147 = vmatpush1.msra.mxu0 0.0
    %148 = vmatprep.subr.mxu0 0.0
    %149 = vmatpush1.msra.mxu0 0.0
    %150 = vmatprep.subr.mxu0 0.0
    %151 = vmatpush1.msra.mxu0 0.0
    %152 = vmatprep.subr.mxu0 0.0
    %153 = vmatpush1.msra.mxu0 0.0
    %154 = vmatprep.subr.mxu0 0.0
    %155 = vmatpush1.msra.mxu0 0.0
    %156 = vmatprep.subr.mxu0 0.0
    %157 = vmatpush1.msra.mxu0 0.0
    %158 = vmatprep.subr.mxu0 0.0
    %159 = vmatpush1.msra.mxu0 0.0
    %160 = vmatprep.subr.mxu0 0.0
    %161 = vmatpush1.msra.mxu0 0.0
    %162 = vmatprep.subr.mxu0 0.0
    %163 = vmatpush1.msra.mxu0 0.0
    %164 = vmatprep.subr.mxu0 0.0
    %165 = vmatpush1.msra.mxu0 0.0
    %166 = vmatprep.subr.mxu0 0.0
    %167 = vmatpush1.msra.mxu0 0.0
    %168 = vmatprep.subr.mxu0 0.0
    %169 = vmatpush1.msra.mxu0 0.0
    %170 = vmatprep.subr.mxu0 0.0
    %171 = vmatpush1.msra.mxu0 0.0
    %172 = vmatprep.subr.mxu0 0.0
    %173 = vmatpush1.msra.mxu0 0.0
    %174 = vmatprep.subr.mxu0 0.0
    %175 = vmatpush1.msra.mxu0 0.0
    %176 = vmatprep.mubr.f32.mxu0 0.0
    %177 = vmatmul.mubr.f32.gmra.mrb[0].mxu0 %v78
    %v178 = vpop.f32.mrb[0].mxu0
    %v179 = vadd.f32 0.0, %v178
    %v180 = vpop.f32.mrb[0].mxu0
    %181 = vmatprep.mubr.f32.mxu0 0.0
    %182 = vmatmul.mubr.f32.gmra.mrb[0].mxu0 %v79
    %v183 = vpop.f32.mrb[0].mxu0
    %v184 = vadd.f32 0.0, %v183
    %v185 = vpop.f32.mrb[0].mxu0
    %186 = vdwg.mxu0
    %187 = vmatprep.subr.mxu0 0.0
    %188 = vmatpush1.msra.mxu0 %v80
    %189 = vmatprep.subr.mxu0 0.0
    %190 = vmatpush1.msra.mxu0 %v81
    %191 = vmatprep.subr.mxu0 0.0
    %192 = vmatpush1.msra.mxu0 %v82
    %193 = vmatprep.subr.mxu0 0.0
    %194 = vmatpush1.msra.mxu0 %v83
    %195 = vmatprep.subr.mxu0 0.0
    %196 = vmatpush1.msra.mxu0 %v84
    %197 = vmatprep.subr.mxu0 0.0
    %198 = vmatpush1.msra.mxu0 %v85
    %199 = vmatprep.subr.mxu0 0.0
    %200 = vmatpush1.msra.mxu0 %v86
    %201 = vmatprep.subr.mxu0 0.0
    %202 = vmatpush1.msra.mxu0 %v87
    %203 = vmatprep.subr.mxu0 0.0
    %204 = vmatpush1.msra.mxu0 %v88
    %205 = vmatprep.subr.mxu0 0.0
    %206 = vmatpush1.msra.mxu0 %v89
    %207 = vmatprep.subr.mxu0 0.0
    %208 = vmatpush1.msra.mxu0 %v90
    %209 = vmatprep.subr.mxu0 0.0
    %210 = vmatpush1.msra.mxu0 %v91
    %211 = vmatprep.subr.mxu0 0.0
    %212 = vmatpush1.msra.mxu0 %v92
    %213 = vmatprep.subr.mxu0 0.0
    %214 = vmatpush1.msra.mxu0 %v93
    %215 = vmatprep.subr.mxu0 0.0
    %216 = vmatpush1.msra.mxu0 %v94
    %217 = vmatprep.subr.mxu0 0.0
    %218 = vmatpush1.msra.mxu0 %v95
    %219 = vmatprep.subr.mxu0 0.0
    %220 = vmatpush1.msra.mxu0 0.0
    %221 = vmatprep.subr.mxu0 0.0
    %222 = vmatpush1.msra.mxu0 0.0
    %223 = vmatprep.subr.mxu0 0.0
    %224 = vmatpush1.msra.mxu0 0.0
    %225 = vmatprep.subr.mxu0 0.0
    %226 = vmatpush1.msra.mxu0 0.0
    %227 = vmatprep.subr.mxu0 0.0
    %228 = vmatpush1.msra.mxu0 0.0
    %229 = vmatprep.subr.mxu0 0.0
    %230 = vmatpush1.msra.mxu0 0.0
    %231 = vmatprep.subr.mxu0 0.0
    %232 = vmatpush1.msra.mxu0 0.0
    %233 = vmatprep.subr.mxu0 0.0
    %234 = vmatpush1.msra.mxu0 0.0
    %235 = vmatprep.subr.mxu0 0.0
    %236 = vmatpush1.msra.mxu0 0.0
    %237 = vmatprep.subr.mxu0 0.0
    %238 = vmatpush1.msra.mxu0 0.0
    %239 = vmatprep.subr.mxu0 0.0
    %240 = vmatpush1.msra.mxu0 0.0
    %241 = vmatprep.subr.mxu0 0.0
    %242 = vmatpush1.msra.mxu0 0.0
    %243 = vmatprep.subr.mxu0 0.0
    %244 = vmatpush1.msra.mxu0 0.0
    %245 = vmatprep.subr.mxu0 0.0
    %246 = vmatpush1.msra.mxu0 0.0
    %247 = vmatprep.subr.mxu0 0.0
    %248 = vmatpush1.msra.mxu0 0.0
    %249 = vmatprep.subr.mxu0 0.0
    %250 = vmatpush1.msra.mxu0 0.0
    %251 = vmatprep.mubr.f32.mxu0 0.0
    %252 = vmatmul.mubr.f32.gmra.mrb[0].mxu0 %v76
    %v253 = vpop.f32.mrb[0].mxu0
    %v254 = vadd.f32 %v179, %v253
    %v255 = vpop.f32.mrb[0].mxu0
    %256 = vmatprep.mubr.f32.mxu0 0.0
    %257 = vmatmul.mubr.f32.gmra.mrb[0].mxu0 %v77
    %v258 = vpop.f32.mrb[0].mxu0
    %v259 = vadd.f32 %v184, %v258
    %v260 = vpop.f32.mrb[0].mxu0
    %261 = vdwg.mxu0
    %v262 = vld [vmem:[%s4] sm:$0x1]
    %v264 = vlaneseq
    %v265 = vshrl.u32 %v264, 7
    %v266 = vsub.s32 0, %v265
    %v267 = vrot.slane %v262, %v266
    %v269 = vadd.f32 %v254, %v267
    %v270 = vadd.f32 %v259, %v267
    %v271 = vxor.u32 %v269, 2147483648
    %v272 = vxor.u32 %v270, 2147483648
    %v273 = vmul.f32 %v271, 1.442695
    %v274 = vpow.pop %v273
    %v275 = vmul.f32 %v272, 1.442695
    %v276 = vpow.pop %v275
    %v277 = vadd.f32 %v274, 1.0
    %v278 = vadd.f32 %v276, 1.0
    %v279 = vrcp.pop %v277
    %v280 = vmul.f32 1.0, %v279
    %v281 = vrcp.pop %v278
    %v282 = vmul.f32 1.0, %v281
    %v283 = vmul.f32 %v280, %v76
    %v284 = vmul.f32 %v282, %v77
    %v285 = vsub.f32 1.0, %v280
    %v286 = vsub.f32 1.0, %v282
    %v287 = vmul.f32 %v285, %v78
    %v288 = vmul.f32 %v286, %v79
    %v289 = vadd.f32 %v283, %v287
    %v290 = vadd.f32 %v284, %v288
    %291 = vst [vmem:[#allocation10] sm:$0xff] %v289
    %292 = vst [vmem:[#allocation10 + $0x8] sm:$0xff] %v290
    // Predicated region
    $region38: #{tpu_custom_call.1} parent=1 // pred_check
      _
    $region39: #{tpu_custom_call.1} parent=1 // pred_check_branch
      %294 = sbr.rel (0) target = $region41
    $region40: #{tpu_custom_call.1} parent=1 // pred_region
      %s296 = ssub.s32 256, 256
      %297 = vsyncadd [#allocation4], %s296
      %s298 = sshll.u32 [#allocation10], 4
      %s299 = int_to_ptr.vmem [resolvable:$true] %s298
      %304 = dma.vmem_to_hbm [thread:$0]  %s299, 256, %s5, [#allocation4], 128, 128, 8
    $region41: #{tpu_custom_call.1} parent=1 // pred_fallthru
      _
    // Predicated region
    $region42: #{tpu_custom_call.1} parent=1 // pred_check
      _
    $region43: #{tpu_custom_call.1} parent=1 // pred_check_branch
      %306 = sbr.rel (0) target = $region45
    $region44: #{tpu_custom_call.1} parent=1 // pred_region
      %307 = dma.done [#allocation4], 256
    $region45: #{tpu_custom_call.1} parent=1 // pred_fallthru
      _
    %308 = vsyncpa [#allocation3], 1
    %309 = vsyncpa [#allocation6], 1
    %310 = vsyncpa [#allocation9], 1
    %311 = vsyncpa [#allocation4], 1

</llo_original>
